<compile_context>
chip_gen: v7x
topology: tpu7x:2x2x1
jax: 0.10.0
libtpu: 0.0.40
codegen_flags: <defaults>
</compile_context>

<pallas_src>
import math

import numpy as np
import jax
import jax.numpy as jnp
from jax.experimental import pallas as pl
from jax.experimental.pallas import tpu as pltpu


def _mamba_kernel(x_ref, pos_ref,
                  wfused_ref, bfused_ref,
                  wb_ref, bb_ref,
                  apow_ref, ainvpow_ref, lbd_ref,
                  wout_ref, bout_ref,
                  o_ref):
    d_inner = wb_ref.shape[0]
    ds = wout_ref.shape[0]                      # = min(d_state, d_inner)

    x = x_ref[...] + pos_ref[...]                                        # (R, D)

    # fused in_proj | gate_proj | C_proj : one MXU pass, static lane slices
    proj = jnp.dot(x, wfused_ref[...],
                   preferred_element_type=jnp.float32) + bfused_ref[...]  # (R, 2*di+ds)
    x_proj = proj[:, :d_inner]
    gate = jax.nn.sigmoid(proj[:, d_inner:2 * d_inner])
    C = proj[:, 2 * d_inner:]                                            # (R, d_state)
    x_gated = x_proj * gate

    B = jnp.dot(x_gated, wb_ref[...],
                preferred_element_type=jnp.float32) + bb_ref[...]        # (R, d_state)

    # closed-form selective scan:
    #   h_t = A^t * sum_{s<=t} A^{-s} B_s
    # realized as a block-diagonal lower-triangular matmul over the batch tile
    # (lbd = kron(I_Bt, tril(ones(S,S)))), with per-channel power tables.
    H = jnp.dot(lbd_ref[...], B * ainvpow_ref[...],
                preferred_element_type=jnp.float32)                      # (R, d_state)
    ys = apow_ref[...] * H * C                                           # (R, d_state)

    # out_proj restricted to the non-zero channels (rest of d_inner is zero)
    out = jnp.dot(ys[:, :ds], wout_ref[...],
                  preferred_element_type=jnp.float32) + bout_ref[...]    # (R, D)
    o_ref[...] = out.astype(o_ref.dtype)


def _pick_batch_tile(batch, seq_len, target_rows=128):
    """Largest divisor of batch whose tile fills >=~target_rows matmul rows."""
    want = max(1, target_rows // max(seq_len, 1))
    bt = 1
    for d in range(1, batch + 1):
        if batch % d == 0 and d <= want:
            bt = d
    # keep the (8,128)-divisibility rule on the row block when tiling
    if bt != batch and (bt * seq_len) % 8 != 0:
        bt = batch
    return bt


def simplified_mamba_pallas(x, params, *, target_rows=128):
    batch, seq_len, d_model = x.shape
    assert seq_len <= params["pos_embedding"].shape[1], "pos_embedding too short"

    win, wg, wc, wb = params["win"], params["wg"], params["wc"], params["wb"]
    d_inner = win.shape[1]
    d_state = wb.shape[1]
    ds = min(d_state, d_inner)

    bt = _pick_batch_tile(batch, seq_len, target_rows)
    rows = bt * seq_len
    grid = (batch // bt,)          # parallel axis -> shards across TCs on v7x

    # ---- grid-invariant prep hoisted out of the kernel -------------------
    pos_t = jnp.tile(params["pos_embedding"][0, :seq_len, :], (bt, 1))   # (rows, D)

    w_fused = jnp.concatenate([win, wg, wc], axis=1)                     # (D, 2di+ds)
    b_fused = jnp.concatenate([params["bin"], params["bg"], params["bc"]], axis=1)

    # dt = 0.01 (matches torch.ones(batch,1)*0.01); A_discrete = exp(dt*exp(A_log))
    A = jnp.exp(0.01 * jnp.exp(params["a_log"]))                         # (1, d_state)
    t_idx = jnp.arange(seq_len, dtype=jnp.float32)[:, None]              # (S, 1)
    a_pow_t = jnp.tile(A ** t_idx, (bt, 1))                              # (rows, d_state)
    a_inv_pow_t = jnp.tile(A ** (-t_idx), (bt, 1))                       # (rows, d_state)
    l_bd = jnp.kron(jnp.eye(bt, dtype=jnp.float32),
                    jnp.tril(jnp.ones((seq_len, seq_len), jnp.float32)))  # (rows, rows)

    wout_s = params["wout"][:ds, :]                                      # (ds, D)
    bout = params["bout"]

    x2d = x.reshape(batch * seq_len, d_model)

    full = lambda a: pl.BlockSpec(a.shape, lambda i: (0,) * a.ndim)

    grid_spec = pltpu.PrefetchScalarGridSpec(
        num_scalar_prefetch=0,
        grid=grid,
        in_specs=[
            pl.BlockSpec((rows, d_model), lambda i: (i, 0)),   # x (batch tile)
            full(pos_t),
            full(w_fused), full(b_fused),
            full(wb), full(params["bb"]),
            full(a_pow_t), full(a_inv_pow_t), full(l_bd),
            full(wout_s), full(bout),
        ],
        out_specs=pl.BlockSpec((rows, d_model), lambda i: (i, 0)),
    )

    out2d = pl.pallas_call(
        _mamba_kernel,
        out_shape=jax.ShapeDtypeStruct((batch * seq_len, d_model), x.dtype),
        grid_spec=grid_spec,
        compiler_params=pltpu.CompilerParams(
            dimension_semantics=("parallel",)),
    )(x2d, pos_t, w_fused, b_fused, wb, params["bb"],
      a_pow_t, a_inv_pow_t, l_bd, wout_s, bout)

    return out2d.reshape(batch, seq_len, d_model)


def init_params(key, d_model, d_state=16, expand=2, dt_min=0.001, dt_max=0.1):
    d_inner = int(d_model * expand)
    ks = jax.random.split(key, 10)
    scale = 0.02

    def lin(kw, kb, din, dout):
        # stored as (din, dout) so the kernel does x @ W; bias as (1, dout)
        w = scale * jax.random.normal(kw, (din, dout), jnp.float32)
        b = scale * jax.random.normal(kb, (1, dout), jnp.float32)
        return w, b

    win, bin_ = lin(ks[0], ks[1], d_model, d_inner)       # in_proj
    wg, bg = lin(ks[2], ks[3], d_model, d_inner)          # gate_proj
    wb, bb = lin(ks[4], ks[5], d_inner, d_state)          # B_proj
    wc, bc = lin(ks[6], ks[7], d_model, d_state)          # C_proj
    wout, bout = lin(ks[8], ks[9], d_inner, d_model)      # out_proj
    a_log = jnp.linspace(math.log(dt_min), math.log(dt_max),
                         d_state, dtype=jnp.float32).reshape(1, d_state)
    pos_embedding = jax.random.normal(jax.random.PRNGKey(123),
                                      (1, 100, d_model), jnp.float32)
    return dict(win=win, bin=bin_, wg=wg, bg=bg, wb=wb, bb=bb,
                wc=wc, bc=bc, a_log=a_log, wout=wout, bout=bout,
                pos_embedding=pos_embedding)


def reference_forward(x, p):
    """Pure-JAX replica of the PyTorch forward (sequential scan)."""
    batch, seq_len, d_model = x.shape
    d_inner = p["win"].shape[1]
    d_state = p["wb"].shape[1]
    x = x + p["pos_embedding"][:, :seq_len, :]
    x_proj = x @ p["win"] + p["bin"]
    gate = jax.nn.sigmoid(x @ p["wg"] + p["bg"])
    x_gated = x_proj * gate
    B = x_gated @ p["wb"] + p["bb"]
    C = x @ p["wc"] + p["bc"]
    dt = jnp.ones((batch, 1), jnp.float32) * 0.01
    A = jnp.exp(dt * jnp.exp(p["a_log"]))                 # (batch, d_state)
    h = jnp.zeros((batch, d_state), jnp.float32)
    outs = []
    for t in range(seq_len):
        h = A * h + B[:, t, :]
        outs.append(h * C[:, t, :])
    ys = jnp.stack(outs, axis=1)                          # (batch, S, d_state)
    out_exp = jnp.zeros((batch, seq_len, d_inner), jnp.float32)
    ds = min(d_state, d_inner)
    out_exp = out_exp.at[:, :, :ds].set(ys[:, :, :ds])
    return out_exp @ p["wout"] + p["bout"]


if __name__ == "__main__":
    key = jax.random.PRNGKey(0)

    # config 1: small shapes implied by the module (single grid step)
    batch, seq_len, d_model, d_state, expand = 2, 8, 32, 16, 2
    kx, kp = jax.random.split(key)
    x = jax.random.normal(kx, (batch, seq_len, d_model), jnp.float32)
    params = init_params(kp, d_model, d_state=d_state, expand=expand)

    out = jax.block_until_ready(simplified_mamba_pallas(x, params))
    ref = jax.block_until_ready(reference_forward(x, params))
    assert out.shape == (batch, seq_len, d_model)
    np.testing.assert_allclose(np.asarray(out), np.asarray(ref),
                               rtol=1e-5, atol=1e-5)

    # config 2: larger batch -> exercises batch-tiling (Bt=16, grid=(2,))
    batch2 = 32
    x2 = jax.random.normal(jax.random.PRNGKey(7),
                           (batch2, seq_len, d_model), jnp.float32)
    out2 = jax.block_until_ready(simplified_mamba_pallas(x2, params))
    ref2 = jax.block_until_ready(reference_forward(x2, params))
    np.testing.assert_allclose(np.asarray(out2), np.asarray(ref2),
                               rtol=1e-5, atol=1e-5)

    print("KERNEL_OK")
</pallas_src>

<mosaic_0001>
module attributes {stable_mosaic.version = 11 : i64} {
  func.func @_mamba_kernel(%arg0: i32, %arg1: memref<16x32xf32, #tpu.memory_space<vmem>>, %arg2: memref<16x32xf32, #tpu.memory_space<vmem>>, %arg3: memref<32x144xf32, #tpu.memory_space<vmem>>, %arg4: memref<1x144xf32, #tpu.memory_space<vmem>>, %arg5: memref<64x16xf32, #tpu.memory_space<vmem>>, %arg6: memref<1x16xf32, #tpu.memory_space<vmem>>, %arg7: memref<16x16xf32, #tpu.memory_space<vmem>>, %arg8: memref<16x16xf32, #tpu.memory_space<vmem>>, %arg9: memref<16x16xf32, #tpu.memory_space<vmem>>, %arg10: memref<16x32xf32, #tpu.memory_space<vmem>>, %arg11: memref<1x32xf32, #tpu.memory_space<vmem>>, %arg12: memref<16x32xf32, #tpu.memory_space<vmem>>) attributes {dimension_semantics = [#tpu.dimension_semantics<parallel>], iteration_bounds = array<i64: 1>, scalar_prefetch = 0 : i64, scratch_operands = 0 : i64, tpu.core_type = #tpu.core_type<tc>, window_params = [{transform_indices = @transform_0, window_bounds = array<i64: 16, 32>}, {pipeline_mode = #tpu.pipeline_mode<synchronous>, transform_indices = @transform_1, window_bounds = array<i64: 16, 32>}, {pipeline_mode = #tpu.pipeline_mode<synchronous>, transform_indices = @transform_2, window_bounds = array<i64: 32, 144>}, {pipeline_mode = #tpu.pipeline_mode<synchronous>, transform_indices = @transform_3, window_bounds = array<i64: 1, 144>}, {pipeline_mode = #tpu.pipeline_mode<synchronous>, transform_indices = @transform_4, window_bounds = array<i64: 64, 16>}, {pipeline_mode = #tpu.pipeline_mode<synchronous>, transform_indices = @transform_5, window_bounds = array<i64: 1, 16>}, {pipeline_mode = #tpu.pipeline_mode<synchronous>, transform_indices = @transform_6, window_bounds = array<i64: 16, 16>}, {pipeline_mode = #tpu.pipeline_mode<synchronous>, transform_indices = @transform_7, window_bounds = array<i64: 16, 16>}, {pipeline_mode = #tpu.pipeline_mode<synchronous>, transform_indices = @transform_8, window_bounds = array<i64: 16, 16>}, {pipeline_mode = #tpu.pipeline_mode<synchronous>, transform_indices = @transform_9, window_bounds = array<i64: 16, 32>}, {pipeline_mode = #tpu.pipeline_mode<synchronous>, transform_indices = @transform_10, window_bounds = array<i64: 1, 32>}, {transform_indices = @transform_11, window_bounds = array<i64: 16, 32>}]} {
    %c0 = arith.constant 0 : index
    %c0_0 = arith.constant 0 : index
    %0 = vector.load %arg1[%c0, %c0_0] : memref<16x32xf32, #tpu.memory_space<vmem>>, vector<16x32xf32>
    %c0_1 = arith.constant 0 : index
    %c0_2 = arith.constant 0 : index
    %1 = vector.load %arg2[%c0_1, %c0_2] : memref<16x32xf32, #tpu.memory_space<vmem>>, vector<16x32xf32>
    %2 = arith.addf %0, %1 : vector<16x32xf32>
    %c0_3 = arith.constant 0 : index
    %c0_4 = arith.constant 0 : index
    %3 = vector.load %arg3[%c0_3, %c0_4] : memref<32x144xf32, #tpu.memory_space<vmem>>, vector<32x144xf32>
    %cst = arith.constant dense<0.000000e+00> : vector<16x144xf32>
    %4 = tpu.matmul %2, %3, %cst {dimension_numbers = #tpu.dot_dimension_numbers<[1], [0], [0], [1], [0, 0, 1, 1], [], []>} : vector<16x32xf32>, vector<32x144xf32>, vector<16x144xf32> -> vector<16x144xf32>
    %c0_5 = arith.constant 0 : index
    %c0_6 = arith.constant 0 : index
    %5 = vector.load %arg4[%c0_5, %c0_6] : memref<1x144xf32, #tpu.memory_space<vmem>>, vector<1x144xf32>
    %6 = vector.broadcast %5 : vector<1x144xf32> to vector<16x144xf32>
    %7 = arith.addf %4, %6 : vector<16x144xf32>
    %8 = vector.extract_strided_slice %7 {offsets = [0, 0], sizes = [16, 64], strides = [1, 1]} : vector<16x144xf32> to vector<16x64xf32>
    %9 = vector.extract_strided_slice %7 {offsets = [0, 64], sizes = [16, 64], strides = [1, 1]} : vector<16x144xf32> to vector<16x64xf32>
    %10 = arith.negf %9 : vector<16x64xf32>
    %11 = math.exp %10 : vector<16x64xf32>
    %cst_7 = arith.constant 1.000000e+00 : f32
    %12 = vector.broadcast %cst_7 : f32 to vector<16x64xf32>
    %13 = arith.addf %12, %11 : vector<16x64xf32>
    %14 = arith.divf %12, %13 : vector<16x64xf32>
    %15 = vector.extract_strided_slice %7 {offsets = [0, 128], sizes = [16, 16], strides = [1, 1]} : vector<16x144xf32> to vector<16x16xf32>
    %16 = arith.mulf %8, %14 : vector<16x64xf32>
    %c0_8 = arith.constant 0 : index
    %c0_9 = arith.constant 0 : index
    %17 = vector.load %arg5[%c0_8, %c0_9] : memref<64x16xf32, #tpu.memory_space<vmem>>, vector<64x16xf32>
    %cst_10 = arith.constant dense<0.000000e+00> : vector<16x16xf32>
    %18 = tpu.matmul %16, %17, %cst_10 {dimension_numbers = #tpu.dot_dimension_numbers<[1], [0], [0], [1], [0, 0, 1, 1], [], []>} : vector<16x64xf32>, vector<64x16xf32>, vector<16x16xf32> -> vector<16x16xf32>
    %c0_11 = arith.constant 0 : index
    %c0_12 = arith.constant 0 : index
    %19 = vector.load %arg6[%c0_11, %c0_12] : memref<1x16xf32, #tpu.memory_space<vmem>>, vector<1x16xf32>
    %20 = vector.broadcast %19 : vector<1x16xf32> to vector<16x16xf32>
    %21 = arith.addf %18, %20 : vector<16x16xf32>
    %c0_13 = arith.constant 0 : index
    %c0_14 = arith.constant 0 : index
    %22 = vector.load %arg9[%c0_13, %c0_14] : memref<16x16xf32, #tpu.memory_space<vmem>>, vector<16x16xf32>
    %c0_15 = arith.constant 0 : index
    %c0_16 = arith.constant 0 : index
    %23 = vector.load %arg8[%c0_15, %c0_16] : memref<16x16xf32, #tpu.memory_space<vmem>>, vector<16x16xf32>
    %24 = arith.mulf %21, %23 : vector<16x16xf32>
    %cst_17 = arith.constant dense<0.000000e+00> : vector<16x16xf32>
    %25 = tpu.matmul %22, %24, %cst_17 {dimension_numbers = #tpu.dot_dimension_numbers<[1], [0], [0], [1], [0, 0, 1, 1], [], []>} : vector<16x16xf32>, vector<16x16xf32>, vector<16x16xf32> -> vector<16x16xf32>
    %c0_18 = arith.constant 0 : index
    %c0_19 = arith.constant 0 : index
    %26 = vector.load %arg7[%c0_18, %c0_19] : memref<16x16xf32, #tpu.memory_space<vmem>>, vector<16x16xf32>
    %27 = arith.mulf %26, %25 : vector<16x16xf32>
    %28 = arith.mulf %27, %15 : vector<16x16xf32>
    %c0_20 = arith.constant 0 : index
    %c0_21 = arith.constant 0 : index
    %29 = vector.load %arg10[%c0_20, %c0_21] : memref<16x32xf32, #tpu.memory_space<vmem>>, vector<16x32xf32>
    %cst_22 = arith.constant dense<0.000000e+00> : vector<16x32xf32>
    %30 = tpu.matmul %28, %29, %cst_22 {dimension_numbers = #tpu.dot_dimension_numbers<[1], [0], [0], [1], [0, 0, 1, 1], [], []>} : vector<16x16xf32>, vector<16x32xf32>, vector<16x32xf32> -> vector<16x32xf32>
    %c0_23 = arith.constant 0 : index
    %c0_24 = arith.constant 0 : index
    %31 = vector.load %arg11[%c0_23, %c0_24] : memref<1x32xf32, #tpu.memory_space<vmem>>, vector<1x32xf32>
    %32 = vector.broadcast %31 : vector<1x32xf32> to vector<16x32xf32>
    %33 = arith.addf %30, %32 : vector<16x32xf32>
    %c0_25 = arith.constant 0 : index
    %c0_26 = arith.constant 0 : index
    %34 = vector.load %arg12[%c0_25, %c0_26] : memref<16x32xf32, #tpu.memory_space<vmem>>, vector<16x32xf32>
    tpu.vector_store %arg12[%c0_25, %c0_26], %33 {strides = array<i32>} : memref<16x32xf32, #tpu.memory_space<vmem>>, vector<16x32xf32>,
    return
  }
  func.func @transform_0(%arg0: i32) -> (i32, i32) {
    %c0_i32 = arith.constant 0 : i32
    %c0_i32_0 = arith.constant 0 : i32
    return %arg0, %c0_i32 : i32, i32
  }
  func.func @transform_1(%arg0: i32) -> (i32, i32) {
    %c0_i32 = arith.constant 0 : i32
    %c0_i32_0 = arith.constant 0 : i32
    %c0_i32_1 = arith.constant 0 : i32
    return %c0_i32, %c0_i32_0 : i32, i32
  }
  func.func @transform_2(%arg0: i32) -> (i32, i32) {
    %c0_i32 = arith.constant 0 : i32
    %c0_i32_0 = arith.constant 0 : i32
    %c0_i32_1 = arith.constant 0 : i32
    return %c0_i32, %c0_i32_0 : i32, i32
  }
  func.func @transform_3(%arg0: i32) -> (i32, i32) {
    %c0_i32 = arith.constant 0 : i32
    %c0_i32_0 = arith.constant 0 : i32
    %c0_i32_1 = arith.constant 0 : i32
    return %c0_i32, %c0_i32_0 : i32, i32
  }
  func.func @transform_4(%arg0: i32) -> (i32, i32) {
    %c0_i32 = arith.constant 0 : i32
    %c0_i32_0 = arith.constant 0 : i32
    %c0_i32_1 = arith.constant 0 : i32
    return %c0_i32, %c0_i32_0 : i32, i32
  }
  func.func @transform_5(%arg0: i32) -> (i32, i32) {
    %c0_i32 = arith.constant 0 : i32
    %c0_i32_0 = arith.constant 0 : i32
    %c0_i32_1 = arith.constant 0 : i32
    return %c0_i32, %c0_i32_0 : i32, i32
  }
  func.func @transform_6(%arg0: i32) -> (i32, i32) {
    %c0_i32 = arith.constant 0 : i32
    %c0_i32_0 = arith.constant 0 : i32
    %c0_i32_1 = arith.constant 0 : i32
    return %c0_i32, %c0_i32_0 : i32, i32
  }
  func.func @transform_7(%arg0: i32) -> (i32, i32) {
    %c0_i32 = arith.constant 0 : i32
    %c0_i32_0 = arith.constant 0 : i32
    %c0_i32_1 = arith.constant 0 : i32
    return %c0_i32, %c0_i32_0 : i32, i32
  }
  func.func @transform_8(%arg0: i32) -> (i32, i32) {
    %c0_i32 = arith.constant 0 : i32
    %c0_i32_0 = arith.constant 0 : i32
    %c0_i32_1 = arith.constant 0 : i32
    return %c0_i32, %c0_i32_0 : i32, i32
  }
  func.func @transform_9(%arg0: i32) -> (i32, i32) {
    %c0_i32 = arith.constant 0 : i32
    %c0_i32_0 = arith.constant 0 : i32
    %c0_i32_1 = arith.constant 0 : i32
    return %c0_i32, %c0_i32_0 : i32, i32
  }
  func.func @transform_10(%arg0: i32) -> (i32, i32) {
    %c0_i32 = arith.constant 0 : i32
    %c0_i32_0 = arith.constant 0 : i32
    %c0_i32_1 = arith.constant 0 : i32
    return %c0_i32, %c0_i32_0 : i32, i32
  }
  func.func @transform_11(%arg0: i32) -> (i32, i32) {
    %c0_i32 = arith.constant 0 : i32
    %c0_i32_0 = arith.constant 0 : i32
    return %arg0, %c0_i32 : i32, i32
  }
}

</mosaic_0001>

<llo_original>
// kernel: tpu_custom_call.1
$region0: #{tpu_custom_call.1}
  #allocation0 [shape = 'u32[]', space=smem, size = 0x4, offset = 0x4, fixed_abs, tag = 'smem constant byte address 0x4 - core index']
  #allocation1 [shape = 'u32[144,128]{1,0:T(1,128)}', space=vmem, size = 0x12000, scoped, tag = 'internal scratch']
  %s0 = inlined_call_operand.vmem [shape: f32[16,32], index: 0, kind: input, shape index: {}]
  %s1 = inlined_call_operand.hbm [shape: f32[16,32], index: 1, kind: input, shape index: {}]
  %s2 = inlined_call_operand.vmem [shape: f32[32,144], index: 2, kind: input, shape index: {}]
  %s3 = inlined_call_operand.vmem [shape: f32[1,144], index: 3, kind: input, shape index: {}]
  %s4 = inlined_call_operand.vmem [shape: f32[64,16], index: 4, kind: input, shape index: {}]
  %s5 = inlined_call_operand.hbm [shape: f32[1,16], index: 5, kind: input, shape index: {}]
  %s6 = inlined_call_operand.vmem [shape: f32[16,16], index: 6, kind: input, shape index: {}]
  %s7 = inlined_call_operand.hbm [shape: f32[16,16], index: 7, kind: input, shape index: {}]
  %s8 = inlined_call_operand.hbm [shape: f32[16,16], index: 8, kind: input, shape index: {}]
  %s9 = inlined_call_operand.vmem [shape: f32[16,32], index: 9, kind: input, shape index: {}]
  %s10 = inlined_call_operand.vmem [shape: f32[1,32], index: 10, kind: input, shape index: {}]
  %s11 = inlined_call_operand.hbm [shape: f32[16,32], index: 11, kind: output, shape index: {}]
  %s12 = sld [smem:[#allocation0]]
  $region70: #{tpu_custom_call.1} parent=0
    _
  %s14 = ssub.s32 1, %s12
  %s15 = scalar_select 0, %s14, %s12
  $region1: #{tpu_custom_call.1} parent=0
    #allocation2 [shape = 'u8[8192]{0}', space=vmem, size = 0x2000, scoped, tag = 'input window, operand 1, single buffered']
    #allocation3 [shape = 's32[1]{0}', space=sflag, size = 0x4, scoped, tag = 'scoped memory for tpu_custom_call.1']
    #allocation4 [shape = 's32[1]{0}', space=sflag, size = 0x4, scoped, tag = 'scoped memory for tpu_custom_call.1']
    #allocation5 [shape = 'u8[512]{0}', space=vmem, size = 0x400, scoped, tag = 'input window, operand 5, single buffered']
    #allocation6 [shape = 's32[1]{0}', space=sflag, size = 0x4, scoped, tag = 'scoped memory for tpu_custom_call.1']
    #allocation7 [shape = 'u8[8192]{0}', space=vmem, size = 0x2000, scoped, tag = 'input window, operand 7, single buffered']
    #allocation8 [shape = 'u8[8192]{0}', space=vmem, size = 0x2000, scoped, tag = 'input window, operand 8, single buffered']
    #allocation9 [shape = 's32[1]{0}', space=sflag, size = 0x4, scoped, tag = 'scoped memory for tpu_custom_call.1']
    #allocation10 [shape = 'u8[8192]{0}', space=vmem, size = 0x2000, scoped, tag = 'output window, operand 0, single buffered']
    %16 = vsyncpa [#allocation3], 0
    %17 = vsyncpa [#allocation6], 0
    %18 = vsyncpa [#allocation9], 0
    %19 = vsyncpa [#allocation4], 0
    // Predicated region
    $region2: #{tpu_custom_call.1} parent=1 // pred_check
      _
    $region3: #{tpu_custom_call.1} parent=1 // pred_check_branch
      %21 = sbr.rel (0) target = $region5
    $region4: #{tpu_custom_call.1} parent=1 // pred_region
      _
    $region5: #{tpu_custom_call.1} parent=1 // pred_fallthru
      _
    // Predicated region
    $region6: #{tpu_custom_call.1} parent=1 // pred_check
      _
    $region7: #{tpu_custom_call.1} parent=1 // pred_check_branch
      %23 = sbr.rel (0) target = $region9
    $region8: #{tpu_custom_call.1} parent=1 // pred_region
      %s25 = ssub.s32 256, 256
      %26 = vsyncadd [#allocation3], %s25
      %s27 = sshll.u32 [#allocation2], 4
      %s28 = int_to_ptr.vmem [resolvable:$true] %s27
      %33 = dma.hbm_to_vmem [thread:$0]  %s1, 256, %s28, [#allocation3], 128, 128, 8
    $region9: #{tpu_custom_call.1} parent=1 // pred_fallthru
      _
    // Predicated region
    $region10: #{tpu_custom_call.1} parent=1 // pred_check
      _
    $region11: #{tpu_custom_call.1} parent=1 // pred_check_branch
      %35 = sbr.rel (0) target = $region13
    $region12: #{tpu_custom_call.1} parent=1 // pred_region
      _
    $region13: #{tpu_custom_call.1} parent=1 // pred_fallthru
      _
    // Predicated region
    $region14: #{tpu_custom_call.1} parent=1 // pred_check
      _
    $region15: #{tpu_custom_call.1} parent=1 // pred_check_branch
      %37 = sbr.rel (0) target = $region17
    $region16: #{tpu_custom_call.1} parent=1 // pred_region
      _
    $region17: #{tpu_custom_call.1} parent=1 // pred_fallthru
      _
    // Predicated region
    $region18: #{tpu_custom_call.1} parent=1 // pred_check
      _
    $region19: #{tpu_custom_call.1} parent=1 // pred_check_branch
      %39 = sbr.rel (0) target = $region21
    $region20: #{tpu_custom_call.1} parent=1 // pred_region
      _
    $region21: #{tpu_custom_call.1} parent=1 // pred_fallthru
      _
    // Predicated region
    $region22: #{tpu_custom_call.1} parent=1 // pred_check
      _
    $region23: #{tpu_custom_call.1} parent=1 // pred_check_branch
      %41 = sbr.rel (0) target = $region25
    $region24: #{tpu_custom_call.1} parent=1 // pred_region
      %s43 = ssub.s32 16, 16
      %44 = vsyncadd [#allocation6], %s43
      %s46 = sshll.u32 [#allocation5], 4
      %s47 = int_to_ptr.vmem [resolvable:$true] %s46
      %49 = dma.hbm_to_vmem [thread:$0]  %s5, 16, %s47, [#allocation6]
    $region25: #{tpu_custom_call.1} parent=1 // pred_fallthru
      _
    // Predicated region
    $region26: #{tpu_custom_call.1} parent=1 // pred_check
      _
    $region27: #{tpu_custom_call.1} parent=1 // pred_check_branch
      %51 = sbr.rel (0) target = $region29
    $region28: #{tpu_custom_call.1} parent=1 // pred_region
      _
    $region29: #{tpu_custom_call.1} parent=1 // pred_fallthru
      _
    // Predicated region
    $region30: #{tpu_custom_call.1} parent=1 // pred_check
      _
    $region31: #{tpu_custom_call.1} parent=1 // pred_check_branch
      %53 = sbr.rel (0) target = $region33
    $region32: #{tpu_custom_call.1} parent=1 // pred_region
      %s55 = ssub.s32 256, 256
      %56 = vsyncadd [#allocation6], %s55
      %s57 = sshll.u32 [#allocation7], 4
      %s58 = int_to_ptr.vmem [resolvable:$true] %s57
      %63 = dma.hbm_to_vmem [thread:$0]  %s7, 256, %s58, [#allocation6], 128, 128, 8
    $region33: #{tpu_custom_call.1} parent=1 // pred_fallthru
      _
    // Predicated region
    $region34: #{tpu_custom_call.1} parent=1 // pred_check
      _
    $region35: #{tpu_custom_call.1} parent=1 // pred_check_branch
      %65 = sbr.rel (0) target = $region37
    $region36: #{tpu_custom_call.1} parent=1 // pred_region
      %s67 = ssub.s32 256, 256
      %68 = vsyncadd [#allocation9], %s67
      %s69 = sshll.u32 [#allocation8], 4
      %s70 = int_to_ptr.vmem [resolvable:$true] %s69
      %75 = dma.hbm_to_vmem [thread:$0]  %s8, 256, %s70, [#allocation9], 128, 128, 8
    $region37: #{tpu_custom_call.1} parent=1 // pred_fallthru
      _
    // Predicated region
    $region38: #{tpu_custom_call.1} parent=1 // pred_check
      _
    $region39: #{tpu_custom_call.1} parent=1 // pred_check_branch
      %77 = sbr.rel (0) target = $region41
    $region40: #{tpu_custom_call.1} parent=1 // pred_region
      _
    $region41: #{tpu_custom_call.1} parent=1 // pred_fallthru
      _
    // Predicated region
    $region42: #{tpu_custom_call.1} parent=1 // pred_check
      _
    $region43: #{tpu_custom_call.1} parent=1 // pred_check_branch
      %79 = sbr.rel (0) target = $region45
    $region44: #{tpu_custom_call.1} parent=1 // pred_region
      _
    $region45: #{tpu_custom_call.1} parent=1 // pred_fallthru
      _
    // Predicated region
    $region46: #{tpu_custom_call.1} parent=1 // pred_check
      _
    $region47: #{tpu_custom_call.1} parent=1 // pred_check_branch
      %81 = sbr.rel (0) target = $region49
    $region48: #{tpu_custom_call.1} parent=1 // pred_region
      %82 = dma.done [#allocation3], 256
    $region49: #{tpu_custom_call.1} parent=1 // pred_fallthru
      _
    // Predicated region
    $region50: #{tpu_custom_call.1} parent=1 // pred_check
      _
    $region51: #{tpu_custom_call.1} parent=1 // pred_check_branch
      %84 = sbr.rel (0) target = $region53
    $region52: #{tpu_custom_call.1} parent=1 // pred_region
      %85 = dma.done [#allocation6], 16
    $region53: #{tpu_custom_call.1} parent=1 // pred_fallthru
      _
    // Predicated region
    $region54: #{tpu_custom_call.1} parent=1 // pred_check
      _
    $region55: #{tpu_custom_call.1} parent=1 // pred_check_branch
      %87 = sbr.rel (0) target = $region57
    $region56: #{tpu_custom_call.1} parent=1 // pred_region
      %88 = dma.done [#allocation6], 256
    $region57: #{tpu_custom_call.1} parent=1 // pred_fallthru
      _
    // Predicated region
    $region58: #{tpu_custom_call.1} parent=1 // pred_check
      _
    $region59: #{tpu_custom_call.1} parent=1 // pred_check_branch
      %90 = sbr.rel (0) target = $region61
    $region60: #{tpu_custom_call.1} parent=1 // pred_region
      %91 = dma.done [#allocation9], 256
    $region61: #{tpu_custom_call.1} parent=1 // pred_fallthru
      _
    %v92 = vld [vmem:[%s0] sm:$0xff]
    %v93 = vld [vmem:[%s0 + $0x8] sm:$0xff]
    %v94 = vld [vmem:[#allocation2] sm:$0xff]
    %v95 = vld [vmem:[#allocation2 + $0x8] sm:$0xff]
    %v96 = vadd.f32 %v92, %v94
    %v97 = vadd.f32 %v93, %v95
    %v98 = vld [vmem:[%s2] sm:$0xff]
    %v99 = vld [vmem:[%s2 + $0x8] sm:$0xff]
    %v100 = vld [vmem:[%s2 + $0x10] sm:$0xff]
    %v101 = vld [vmem:[%s2 + $0x18] sm:$0xff]
    %v102 = vld [vmem:[%s2 + $0x20] sm:$0xff]
    %v103 = vld [vmem:[%s2 + $0x28] sm:$0xff]
    %v104 = vld [vmem:[%s2 + $0x30] sm:$0xff]
    %v105 = vld [vmem:[%s2 + $0x38] sm:$0xff]
    %v106 = vld [vmem:[%s3] sm:$0x3]
    %v108 = vlaneseq
    %v109 = vshrl.u32 %v108, 7
    %v110 = vsub.s32 0, %v109
    %v111 = vrot.slane %v106, %v110
    %v112 = vlaneseq
    %v113 = vshrl.u32 %v112, 7
    %v114 = vsub.s32 1, %v113
    %v115 = vrot.slane %v106, %v114
    %vm118 = vcmask 261120
    %v120 = vsel %vm118, %v96, 0
    %v123 = vsel %vm118, %v97, 0
    %125 = vmatprep.subr.mxu0 %v99
    %126 = vmatpush1.msra.mxu0 %v98
    %127 = vmatprep.subr.mxu0 %v101
    %128 = vmatpush1.msra.mxu0 %v100
    %129 = vmatprep.subr.mxu0 %v103
    %130 = vmatpush1.msra.mxu0 %v102
    %131 = vmatprep.subr.mxu0 %v105
    %132 = vmatpush1.msra.mxu0 %v104
    %133 = vmatprep.subr.mxu0 0.0
    %134 = vmatpush1.msra.mxu0 0.0
    %135 = vmatprep.subr.mxu0 0.0
    %136 = vmatpush1.msra.mxu0 0.0
    %137 = vmatprep.subr.mxu0 0.0
    %138 = vmatpush1.msra.mxu0 0.0
    %139 = vmatprep.subr.mxu0 0.0
    %140 = vmatpush1.msra.mxu0 0.0
    %141 = vmatprep.subr.mxu0 0.0
    %142 = vmatpush1.msra.mxu0 0.0
    %143 = vmatprep.subr.mxu0 0.0
    %144 = vmatpush1.msra.mxu0 0.0
    %145 = vmatprep.subr.mxu0 0.0
    %146 = vmatpush1.msra.mxu0 0.0
    %147 = vmatprep.subr.mxu0 0.0
    %148 = vmatpush1.msra.mxu0 0.0
    %149 = vmatprep.subr.mxu0 0.0
    %150 = vmatpush1.msra.mxu0 0.0
    %151 = vmatprep.subr.mxu0 0.0
    %152 = vmatpush1.msra.mxu0 0.0
    %153 = vmatprep.subr.mxu0 0.0
    %154 = vmatpush1.msra.mxu0 0.0
    %155 = vmatprep.subr.mxu0 0.0
    %156 = vmatpush1.msra.mxu0 0.0
    %157 = vmatprep.subr.mxu0 0.0
    %158 = vmatpush1.msra.mxu0 0.0
    %159 = vmatprep.subr.mxu0 0.0
    %160 = vmatpush1.msra.mxu0 0.0
    %161 = vmatprep.subr.mxu0 0.0
    %162 = vmatpush1.msra.mxu0 0.0
    %163 = vmatprep.subr.mxu0 0.0
    %164 = vmatpush1.msra.mxu0 0.0
    %165 = vmatprep.subr.mxu0 0.0
    %166 = vmatpush1.msra.mxu0 0.0
    %167 = vmatprep.subr.mxu0 0.0
    %168 = vmatpush1.msra.mxu0 0.0
    %169 = vmatprep.subr.mxu0 0.0
    %170 = vmatpush1.msra.mxu0 0.0
    %171 = vmatprep.subr.mxu0 0.0
    %172 = vmatpush1.msra.mxu0 0.0
    %173 = vmatprep.subr.mxu0 0.0
    %174 = vmatpush1.msra.mxu0 0.0
    %175 = vmatprep.subr.mxu0 0.0
    %176 = vmatpush1.msra.mxu0 0.0
    %177 = vmatprep.subr.mxu0 0.0
    %178 = vmatpush1.msra.mxu0 0.0
    %179 = vmatprep.subr.mxu0 0.0
    %180 = vmatpush1.msra.mxu0 0.0
    %181 = vmatprep.subr.mxu0 0.0
    %182 = vmatpush1.msra.mxu0 0.0
    %183 = vmatprep.subr.mxu0 0.0
    %184 = vmatpush1.msra.mxu0 0.0
    %185 = vmatprep.subr.mxu0 0.0
    %186 = vmatpush1.msra.mxu0 0.0
    %187 = vmatprep.subr.mxu0 0.0
    %188 = vmatpush1.msra.mxu0 0.0
    %189 = vmatprep.mubr.f32.mxu0 0.0
    %190 = vmatmul.mubr.f32.gmra.mrb[0].mxu0 %v120
    %v191 = vpop.f32.mrb[0].mxu0
    %v192 = vadd.f32 %v111, %v191
    %v193 = vpop.f32.mrb[0].mxu0
    %v194 = vadd.f32 %v115, %v193
    %195 = vmatprep.mubr.f32.mxu0 0.0
    %196 = vmatmul.mubr.f32.gmra.mrb[0].mxu0 %v123
    %v197 = vpop.f32.mrb[0].mxu0
    %v198 = vadd.f32 %v111, %v197
    %v199 = vpop.f32.mrb[0].mxu0
    %v200 = vadd.f32 %v115, %v199
    %201 = vdwg.mxu0
    %v202 = vxor.u32 %v192, 2147483648
    %v203 = vxor.u32 %v198, 2147483648
    %v204 = vmul.f32 %v202, 1.442695
    %v205 = vpow.pop %v204
    %v206 = vmul.f32 %v203, 1.442695
    %v207 = vpow.pop %v206
    %v208 = vadd.f32 %v205, 1.0
    %v209 = vadd.f32 %v207, 1.0
    %v210 = vrcp.pop %v208
    %v211 = vmul.f32 1.0, %v210
    %v212 = vrcp.pop %v209
    %v213 = vmul.f32 1.0, %v212
    %216 = vrot.lane.b32.xlu0 %v211, 64
    %v217 = vpop.permute.xlu0 %216
    %218 = vrot.lane.b32.xlu0 %v213, 64
    %v219 = vpop.permute.xlu0 %218
    %v222 = vmul.f32 %v192, %v217
    %v223 = vmul.f32 %v198, %v219
    %v224 = vld [vmem:[%s4] sm:$0xff]
    %v225 = vld [vmem:[%s4 + $0x8] sm:$0xff]
    %v226 = vld [vmem:[%s4 + $0x10] sm:$0xff]
    %v227 = vld [vmem:[%s4 + $0x18] sm:$0xff]
    %v228 = vld [vmem:[%s4 + $0x20] sm:$0xff]
    %v229 = vld [vmem:[%s4 + $0x28] sm:$0xff]
    %v230 = vld [vmem:[%s4 + $0x30] sm:$0xff]
    %v231 = vld [vmem:[%s4 + $0x38] sm:$0xff]
    %v232 = vld [vmem:[#allocation5] sm:$0x1]
    %v234 = vlaneseq
    %v235 = vshrl.u32 %v234, 7
    %v236 = vsub.s32 0, %v235
    %v237 = vrot.slane %v232, %v236
    %vm239 = vcmask 523264
    %v241 = vsel %vm239, %v222, 0
    %v244 = vsel %vm239, %v223, 0
    %246 = vmatprep.subr.mxu0 0.0
    %247 = vmatpush1.msra.mxu0 %v224
    %248 = vmatprep.subr.mxu0 0.0
    %249 = vmatpush1.msra.mxu0 %v225
    %250 = vmatprep.subr.mxu0 0.0
    %251 = vmatpush1.msra.mxu0 %v226
    %252 = vmatprep.subr.mxu0 0.0
    %253 = vmatpush1.msra.mxu0 %v227
    %254 = vmatprep.subr.mxu0 0.0
    %255 = vmatpush1.msra.mxu0 %v228
    %256 = vmatprep.subr.mxu0 0.0
    %257 = vmatpush1.msra.mxu0 %v229
    %258 = vmatprep.subr.mxu0 0.0
    %259 = vmatpush1.msra.mxu0 %v230
    %260 = vmatprep.subr.mxu0 0.0
    %261 = vmatpush1.msra.mxu0 %v231
    %262 = vmatprep.subr.mxu0 0.0
    %263 = vmatpush1.msra.mxu0 0.0
    %264 = vmatprep.subr.mxu0 0.0
    %265 = vmatpush1.msra.mxu0 0.0
    %266 = vmatprep.subr.mxu0 0.0
    %267 = vmatpush1.msra.mxu0 0.0
    %268 = vmatprep.subr.mxu0 0.0
    %269 = vmatpush1.msra.mxu0 0.0
    %270 = vmatprep.subr.mxu0 0.0
    %271 = vmatpush1.msra.mxu0 0.0
    %272 = vmatprep.subr.mxu0 0.0
    %273 = vmatpush1.msra.mxu0 0.0
    %274 = vmatprep.subr.mxu0 0.0
    %275 = vmatpush1.msra.mxu0 0.0
    %276 = vmatprep.subr.mxu0 0.0
    %277 = vmatpush1.msra.mxu0 0.0
    %278 = vmatprep.subr.mxu0 0.0
    %279 = vmatpush1.msra.mxu0 0.0
    %280 = vmatprep.subr.mxu0 0.0
    %281 = vmatpush1.msra.mxu0 0.0
    %282 = vmatprep.subr.mxu0 0.0
    %283 = vmatpush1.msra.mxu0 0.0
    %284 = vmatprep.subr.mxu0 0.0
    %285 = vmatpush1.msra.mxu0 0.0
    %286 = vmatprep.subr.mxu0 0.0
    %287 = vmatpush1.msra.mxu0 0.0
    %288 = vmatprep.subr.mxu0 0.0
    %289 = vmatpush1.msra.mxu0 0.0
    %290 = vmatprep.subr.mxu0 0.0
    %291 = vmatpush1.msra.mxu0 0.0
    %292 = vmatprep.subr.mxu0 0.0
    %293 = vmatpush1.msra.mxu0 0.0
    %294 = vmatprep.subr.mxu0 0.0
    %295 = vmatpush1.msra.mxu0 0.0
    %296 = vmatprep.subr.mxu0 0.0
    %297 = vmatpush1.msra.mxu0 0.0
    %298 = vmatprep.subr.mxu0 0.0
    %299 = vmatpush1.msra.mxu0 0.0
    %300 = vmatprep.subr.mxu0 0.0
    %301 = vmatpush1.msra.mxu0 0.0
    %302 = vmatprep.subr.mxu0 0.0
    %303 = vmatpush1.msra.mxu0 0.0
    %304 = vmatprep.subr.mxu0 0.0
    %305 = vmatpush1.msra.mxu0 0.0
    %306 = vmatprep.subr.mxu0 0.0
    %307 = vmatpush1.msra.mxu0 0.0
    %308 = vmatprep.subr.mxu0 0.0
    %309 = vmatpush1.msra.mxu0 0.0
    %310 = vmatprep.mubr.f32.mxu0 0.0
    %311 = vmatmul.mubr.f32.gmra.mrb[0].mxu0 %v241
    %v312 = vpop.f32.mrb[0].mxu0
    %v313 = vadd.f32 %v237, %v312
    %v314 = vpop.f32.mrb[0].mxu0
    %315 = vmatprep.mubr.f32.mxu0 0.0
    %316 = vmatmul.mubr.f32.gmra.mrb[0].mxu0 %v244
    %v317 = vpop.f32.mrb[0].mxu0
    %v318 = vadd.f32 %v237, %v317
    %v319 = vpop.f32.mrb[0].mxu0
    %320 = vdwg.mxu0
    %v321 = vld [vmem:[#allocation8] sm:$0xff]
    %v322 = vld [vmem:[#allocation8 + $0x8] sm:$0xff]
    %v323 = vld [vmem:[#allocation7] sm:$0xff]
    %v324 = vld [vmem:[#allocation7 + $0x8] sm:$0xff]
    %v325 = vmul.f32 %v313, %v323
    %v326 = vmul.f32 %v318, %v324
    %vm327 = vcmask 130048
    %v329 = vsel %vm327, %v321, 0
    %v332 = vsel %vm327, %v322, 0
    %334 = vmatprep.subr.mxu0 0.0
    %335 = vmatpush1.msra.mxu0 %v325
    %336 = vmatprep.subr.mxu0 0.0
    %337 = vmatpush1.msra.mxu0 %v326
    %338 = vmatprep.subr.mxu0 0.0
    %339 = vmatpush1.msra.mxu0 0.0
    %340 = vmatprep.subr.mxu0 0.0
    %341 = vmatpush1.msra.mxu0 0.0
    %342 = vmatprep.subr.mxu0 0.0
    %343 = vmatpush1.msra.mxu0 0.0
    %344 = vmatprep.subr.mxu0 0.0
    %345 = vmatpush1.msra.mxu0 0.0
    %346 = vmatprep.subr.mxu0 0.0
    %347 = vmatpush1.msra.mxu0 0.0
    %348 = vmatprep.subr.mxu0 0.0
    %349 = vmatpush1.msra.mxu0 0.0
    %350 = vmatprep.subr.mxu0 0.0
    %351 = vmatpush1.msra.mxu0 0.0
    %352 = vmatprep.subr.mxu0 0.0
    %353 = vmatpush1.msra.mxu0 0.0
    %354 = vmatprep.subr.mxu0 0.0
    %355 = vmatpush1.msra.mxu0 0.0
    %356 = vmatprep.subr.mxu0 0.0
    %357 = vmatpush1.msra.mxu0 0.0
    %358 = vmatprep.subr.mxu0 0.0
    %359 = vmatpush1.msra.mxu0 0.0
    %360 = vmatprep.subr.mxu0 0.0
    %361 = vmatpush1.msra.mxu0 0.0
    %362 = vmatprep.subr.mxu0 0.0
    %363 = vmatpush1.msra.mxu0 0.0
    %364 = vmatprep.subr.mxu0 0.0
    %365 = vmatpush1.msra.mxu0 0.0
    %366 = vmatprep.subr.mxu0 0.0
    %367 = vmatpush1.msra.mxu0 0.0
    %368 = vmatprep.subr.mxu0 0.0
    %369 = vmatpush1.msra.mxu0 0.0
    %370 = vmatprep.subr.mxu0 0.0
    %371 = vmatpush1.msra.mxu0 0.0
    %372 = vmatprep.subr.mxu0 0.0
    %373 = vmatpush1.msra.mxu0 0.0
    %374 = vmatprep.subr.mxu0 0.0
    %375 = vmatpush1.msra.mxu0 0.0
    %376 = vmatprep.subr.mxu0 0.0
    %377 = vmatpush1.msra.mxu0 0.0
    %378 = vmatprep.subr.mxu0 0.0
    %379 = vmatpush1.msra.mxu0 0.0
    %380 = vmatprep.subr.mxu0 0.0
    %381 = vmatpush1.msra.mxu0 0.0
    %382 = vmatprep.subr.mxu0 0.0
    %383 = vmatpush1.msra.mxu0 0.0
    %384 = vmatprep.subr.mxu0 0.0
    %385 = vmatpush1.msra.mxu0 0.0
    %386 = vmatprep.subr.mxu0 0.0
    %387 = vmatpush1.msra.mxu0 0.0
    %388 = vmatprep.subr.mxu0 0.0
    %389 = vmatpush1.msra.mxu0 0.0
    %390 = vmatprep.subr.mxu0 0.0
    %391 = vmatpush1.msra.mxu0 0.0
    %392 = vmatprep.subr.mxu0 0.0
    %393 = vmatpush1.msra.mxu0 0.0
    %394 = vmatprep.subr.mxu0 0.0
    %395 = vmatpush1.msra.mxu0 0.0
    %396 = vmatprep.subr.mxu0 0.0
    %397 = vmatpush1.msra.mxu0 0.0
    %398 = vmatprep.mubr.f32.mxu0 0.0
    %399 = vmatmul.mubr.f32.gmra.mrb[0].mxu0 %v329
    %v400 = vpop.f32.mrb[0].mxu0
    %v401 = vadd.f32 0.0, %v400
    %v402 = vpop.f32.mrb[0].mxu0
    %403 = vmatprep.mubr.f32.mxu0 0.0
    %404 = vmatmul.mubr.f32.gmra.mrb[0].mxu0 %v332
    %v405 = vpop.f32.mrb[0].mxu0
    %v406 = vadd.f32 0.0, %v405
    %v407 = vpop.f32.mrb[0].mxu0
    %408 = vdwg.mxu0
    %v409 = vld [vmem:[%s6] sm:$0xff]
    %v410 = vld [vmem:[%s6 + $0x8] sm:$0xff]
    %v411 = vmul.f32 %v409, %v401
    %v412 = vmul.f32 %v410, %v406
    %v413 = vmul.f32 %v411, %v194
    %v414 = vmul.f32 %v412, %v200
    %v415 = vld [vmem:[%s9] sm:$0xff]
    %v416 = vld [vmem:[%s9 + $0x8] sm:$0xff]
    %v417 = vld [vmem:[%s10] sm:$0x1]
    %v419 = vlaneseq
    %v420 = vshrl.u32 %v419, 7
    %v421 = vsub.s32 0, %v420
    %v422 = vrot.slane %v417, %v421
    %v425 = vsel %vm327, %v413, 0
    %v428 = vsel %vm327, %v414, 0
    %430 = vmatprep.subr.mxu0 0.0
    %431 = vmatpush1.msra.mxu0 %v415
    %432 = vmatprep.subr.mxu0 0.0
    %433 = vmatpush1.msra.mxu0 %v416
    %434 = vmatprep.subr.mxu0 0.0
    %435 = vmatpush1.msra.mxu0 0.0
    %436 = vmatprep.subr.mxu0 0.0
    %437 = vmatpush1.msra.mxu0 0.0
    %438 = vmatprep.subr.mxu0 0.0
    %439 = vmatpush1.msra.mxu0 0.0
    %440 = vmatprep.subr.mxu0 0.0
    %441 = vmatpush1.msra.mxu0 0.0
    %442 = vmatprep.subr.mxu0 0.0
    %443 = vmatpush1.msra.mxu0 0.0
    %444 = vmatprep.subr.mxu0 0.0
    %445 = vmatpush1.msra.mxu0 0.0
    %446 = vmatprep.subr.mxu0 0.0
    %447 = vmatpush1.msra.mxu0 0.0
    %448 = vmatprep.subr.mxu0 0.0
    %449 = vmatpush1.msra.mxu0 0.0
    %450 = vmatprep.subr.mxu0 0.0
    %451 = vmatpush1.msra.mxu0 0.0
    %452 = vmatprep.subr.mxu0 0.0
    %453 = vmatpush1.msra.mxu0 0.0
    %454 = vmatprep.subr.mxu0 0.0
    %455 = vmatpush1.msra.mxu0 0.0
    %456 = vmatprep.subr.mxu0 0.0
    %457 = vmatpush1.msra.mxu0 0.0
    %458 = vmatprep.subr.mxu0 0.0
    %459 = vmatpush1.msra.mxu0 0.0
    %460 = vmatprep.subr.mxu0 0.0
    %461 = vmatpush1.msra.mxu0 0.0
    %462 = vmatprep.subr.mxu0 0.0
    %463 = vmatpush1.msra.mxu0 0.0
    %464 = vmatprep.subr.mxu0 0.0
    %465 = vmatpush1.msra.mxu0 0.0
    %466 = vmatprep.subr.mxu0 0.0
    %467 = vmatpush1.msra.mxu0 0.0
    %468 = vmatprep.subr.mxu0 0.0
    %469 = vmatpush1.msra.mxu0 0.0
    %470 = vmatprep.subr.mxu0 0.0
    %471 = vmatpush1.msra.mxu0 0.0
    %472 = vmatprep.subr.mxu0 0.0
    %473 = vmatpush1.msra.mxu0 0.0
    %474 = vmatprep.subr.mxu0 0.0
    %475 = vmatpush1.msra.mxu0 0.0
    %476 = vmatprep.subr.mxu0 0.0
    %477 = vmatpush1.msra.mxu0 0.0
    %478 = vmatprep.subr.mxu0 0.0
    %479 = vmatpush1.msra.mxu0 0.0
    %480 = vmatprep.subr.mxu0 0.0
    %481 = vmatpush1.msra.mxu0 0.0
    %482 = vmatprep.subr.mxu0 0.0
    %483 = vmatpush1.msra.mxu0 0.0
    %484 = vmatprep.subr.mxu0 0.0
    %485 = vmatpush1.msra.mxu0 0.0
    %486 = vmatprep.subr.mxu0 0.0
    %487 = vmatpush1.msra.mxu0 0.0
    %488 = vmatprep.subr.mxu0 0.0
    %489 = vmatpush1.msra.mxu0 0.0
    %490 = vmatprep.subr.mxu0 0.0
    %491 = vmatpush1.msra.mxu0 0.0
    %492 = vmatprep.subr.mxu0 0.0
    %493 = vmatpush1.msra.mxu0 0.0
    %494 = vmatprep.mubr.f32.mxu0 0.0
    %495 = vmatmul.mubr.f32.gmra.mrb[0].mxu0 %v425
    %v496 = vpop.f32.mrb[0].mxu0
    %v497 = vadd.f32 %v422, %v496
    %v498 = vpop.f32.mrb[0].mxu0
    %499 = vmatprep.mubr.f32.mxu0 0.0
    %500 = vmatmul.mubr.f32.gmra.mrb[0].mxu0 %v428
    %v501 = vpop.f32.mrb[0].mxu0
    %v502 = vadd.f32 %v422, %v501
    %v503 = vpop.f32.mrb[0].mxu0
    %504 = vdwg.mxu0
    %505 = vst.msk [vmem:[#allocation10] sm:$0xff] %vm118, %v497
    %506 = vst.msk [vmem:[#allocation10 + $0x8] sm:$0xff] %vm118, %v502
    // Predicated region
    $region62: #{tpu_custom_call.1} parent=1 // pred_check
      _
    $region63: #{tpu_custom_call.1} parent=1 // pred_check_branch
      %508 = sbr.rel (0) target = $region65
    $region64: #{tpu_custom_call.1} parent=1 // pred_region
      %s510 = ssub.s32 256, 256
      %511 = vsyncadd [#allocation4], %s510
      %s512 = sshll.u32 [#allocation10], 4
      %s513 = int_to_ptr.vmem [resolvable:$true] %s512
      %518 = dma.vmem_to_hbm [thread:$0]  %s513, 256, %s11, [#allocation4], 128, 128, 8
    $region65: #{tpu_custom_call.1} parent=1 // pred_fallthru
      _
    // Predicated region
    $region66: #{tpu_custom_call.1} parent=1 // pred_check
      _
    $region67: #{tpu_custom_call.1} parent=1 // pred_check_branch
      %520 = sbr.rel (0) target = $region69
    $region68: #{tpu_custom_call.1} parent=1 // pred_region
      %521 = dma.done [#allocation4], 256
    $region69: #{tpu_custom_call.1} parent=1 // pred_fallthru
      _
    %522 = vsyncpa [#allocation3], 1
    %523 = vsyncpa [#allocation6], 1
    %524 = vsyncpa [#allocation9], 1
    %525 = vsyncpa [#allocation4], 1

</llo_original>
